<compile_context>
chip_gen: v7x
topology: tpu7x:2x2x1
jax: 0.10.0
libtpu: 0.0.40
codegen_flags: <defaults>
</compile_context>

<pallas_src>
import functools

import jax
import jax.numpy as jnp
from jax.experimental import pallas as pl
from jax.experimental.pallas import tpu as pltpu


def _round_up(x, m):
    return ((x + m - 1) // m) * m


def _vmem_capacity_bytes(default=64 * 1024 * 1024):
    """Trace-time VMEM capacity query with a conservative fallback."""
    try:
        cap = getattr(pltpu.get_tpu_info(), "vmem_capacity_bytes", None)
        if cap:
            return int(cap)
    except Exception:
        pass
    return default


# ----------------------------- kernels ------------------------------------


def _ent_init_single_strip_kernel(feat_ref, emb_ref, out_ref):
    """grid = (N_tiles,).  Whole attribute axis resident in VMEM.

    One MXU dot per row tile (int8 feat upcast to emb dtype in-register),
    a cross-lane row-sum (XLU), and an EUP reciprocal for the normalize.
    pt_emb has a constant block index, so it is fetched from HBM only once.
    """
    feat = feat_ref[...].astype(emb_ref.dtype)                     # (tm, A)
    num = jnp.dot(feat, emb_ref[...],
                  preferred_element_type=jnp.float32)              # (tm, D) f32
    rsum = jnp.sum(feat, axis=-1, keepdims=True, dtype=jnp.float32)
    inv = pl.reciprocal(rsum + 1e-6, approx=False)                 # EUP, exact
    out_ref[...] = (num * inv).astype(out_ref.dtype)


def _ent_init_ktiled_kernel(feat_ref, emb_ref, out_ref, rsum_ref, *,
                            tk, emb_resident):
    """Fallback for very large A.  grid = (N_tiles, K_tiles); the attribute
    axis is the last (reduction, "arbitrary") grid axis.

    Partial products accumulate directly into the f32 output tile (constant
    block index over k).  When pt_emb fits VMEM it stays fully resident and
    is sliced per k step; otherwise it streams in (tk, D) chunks.  The last
    k step folds the final accumulate with the 1/rowsum scale.
    """
    k = pl.program_id(1)
    nk = pl.num_programs(1)

    feat = feat_ref[...].astype(emb_ref.dtype)                     # (tm, tk)
    if emb_resident:
        row0 = pl.multiple_of(k * tk, tk)
        emb = emb_ref[pl.ds(row0, tk), :]                          # resident slice
    else:
        emb = emb_ref[...]                                         # streamed chunk
    partial = jnp.dot(feat, emb, preferred_element_type=jnp.float32)
    psum = jnp.sum(feat, axis=-1, keepdims=True, dtype=jnp.float32)

    @pl.when(k == 0)
    def _():
        out_ref[...] = jnp.zeros_like(out_ref)
        rsum_ref[...] = jnp.zeros_like(rsum_ref)

    rsum_ref[...] += psum

    @pl.when(k < nk - 1)
    def _():
        out_ref[...] += partial

    @pl.when(k == nk - 1)
    def _():
        inv = pl.reciprocal(rsum_ref[...] + 1e-6, approx=False)
        out_ref[...] = (out_ref[...] + partial) * inv


# ----------------------------- wrapper -------------------------------------


def ent_init_with_attr(attr_feat, pt_emb, *,
                       feat_dtype=jnp.int8, emb_dtype=jnp.bfloat16):
    """attr_feat: [N, A], pt_emb: [A, D]  ->  [N, D] float32.

    feat_dtype=int8 assumes indicator (0/1 or small-integer) attribute
    features (exact); pass jnp.bfloat16 / jnp.float32 for general values.
    """
    N, A = attr_feat.shape
    A2, D = pt_emb.shape
    assert A == A2, "attr_feat / pt_emb inner dims must match"

    feat_isz = jnp.dtype(feat_dtype).itemsize
    emb_isz = jnp.dtype(emb_dtype).itemsize

    # Generation-aware VMEM ask: ~96 MiB on 128 MiB parts (v5e/v6e),
    # ~48 MiB on v7x (64 MiB per TensorCore).
    vmem_cap = _vmem_capacity_bytes()
    vmem_limit = min(vmem_cap * 3 // 4, 96 * 1024 * 1024)
    vmem_budget = int(vmem_limit * 0.85)

    # Lane-axis padding (zero columns/rows are exact no-ops for both the
    # matmul and the row sum; padded output rows/cols are sliced off).
    Ap = _round_up(A, 128)
    Dp = _round_up(D, 128)

    # ---- row-tile selection: mem-bound, so as big as VMEM allows ----------
    def strip_bytes(tm_):
        return (2 * tm_ * Ap * feat_isz      # double-buffered int8 feat strip
                + 2 * Ap * Dp * emb_isz      # resident emb (conservative 2x)
                + 2 * tm_ * Dp * 4)          # double-buffered f32 out tile

    row_cap = _round_up(max(N, 32), 32)      # int8 sublane quantum is 32
    tm = None
    for cand in (1024, 512, 256, 128, 64, 32):
        if cand <= row_cap and strip_bytes(cand) <= vmem_budget:
            tm = cand
            break

    if tm is not None:
        # Keep >=2 steps on the parallel row axis so both v7x TCs get work.
        while tm > 32 and _round_up(N, tm) // tm < 2:
            tm //= 2
        Np = _round_up(N, tm)
        grid = (Np // tm,)
        in_specs = [
            pl.BlockSpec((tm, Ap), lambda i: (i, 0)),
            # Constant block index: DMA'd from HBM once, stays resident.
            pl.BlockSpec((Ap, Dp), lambda i: (0, 0)),
        ]
        out_spec = pl.BlockSpec((tm, Dp), lambda i: (i, 0))
        kernel = _ent_init_single_strip_kernel
        scratch = ()
        dims = ("parallel",)
    else:
        # ---- K-tiled fallback for very large A ----------------------------
        tm = 32
        for cand in (512, 256, 128, 64, 32):
            if cand <= row_cap:
                tm = cand
                break
        Np = _round_up(N, tm)

        emb_resident = 2 * Ap * Dp * emb_isz <= vmem_budget // 2
        tk = 128
        for cand in (4096, 2048, 1024, 512, 256, 128):
            feat_term = 2 * tm * cand * feat_isz
            emb_term = (2 * Ap * Dp * emb_isz if emb_resident
                        else 2 * cand * Dp * emb_isz)
            if feat_term + emb_term + 2 * tm * Dp * 4 <= vmem_budget:
                tk = cand
                break
        Ap = _round_up(A, tk)
        grid = (Np // tm, Ap // tk)

        if emb_resident:
            emb_spec = pl.BlockSpec((Ap, Dp), lambda i, k: (0, 0))
        else:
            emb_spec = pl.BlockSpec((tk, Dp), lambda i, k: (k, 0))
        in_specs = [pl.BlockSpec((tm, tk), lambda i, k: (i, k)), emb_spec]
        out_spec = pl.BlockSpec((tm, Dp), lambda i, k: (i, 0))
        kernel = functools.partial(_ent_init_ktiled_kernel, tk=tk,
                                   emb_resident=emb_resident)
        scratch = (pltpu.VMEM((tm, 1), jnp.float32),)  # row-sum accumulator
        dims = ("parallel", "arbitrary")               # reduction axis last

    # ---- cast + pad inputs -------------------------------------------------
    feat = attr_feat.astype(feat_dtype)
    emb = pt_emb.astype(emb_dtype)
    if (Np, Ap) != (N, A):
        feat = jnp.pad(feat, ((0, Np - N), (0, Ap - A)))
    if (Ap, Dp) != (A, D):
        emb = jnp.pad(emb, ((0, Ap - A), (0, Dp - D)))

    out = pl.pallas_call(
        kernel,
        out_shape=jax.ShapeDtypeStruct((Np, Dp), jnp.float32),
        grid_spec=pltpu.PrefetchScalarGridSpec(
            num_scalar_prefetch=0,
            grid=grid,
            in_specs=in_specs,
            out_specs=out_spec,
            scratch_shapes=scratch,
        ),
        compiler_params=pltpu.CompilerParams(
            dimension_semantics=dims,
            vmem_limit_bytes=vmem_limit,
        ),
    )(feat, emb)

    if (Np, Dp) != (N, D):
        out = out[:N, :D]
    return out


def _reference(attr_feat, pt_emb, *, feat_dtype=jnp.int8,
               emb_dtype=jnp.bfloat16):
    """Pure-JAX reference using the same storage precision as the kernel
    (int8 is exact for 0/1 features; emb matches the kernel's bf16 cast)."""
    f = attr_feat.astype(feat_dtype).astype(jnp.float32)
    e = pt_emb.astype(emb_dtype).astype(jnp.float32)
    num = jnp.matmul(f, e, precision=jax.lax.Precision.HIGHEST)
    den = jnp.sum(f, axis=-1, keepdims=True) + 1e-6
    return num / den


if __name__ == "__main__":
    key = jax.random.PRNGKey(0)
    k_feat, k_emb = jax.random.split(key)

    # Small, module-consistent shapes:
    #   N = 128 graph nodes, A = 256 attribute vocab, D = 128 embedding dim.
    N, A, D = 128, 256, 128

    # Sparse 0/1 multi-hot attribute indicator features.
    raw = jax.random.uniform(k_feat, (N, A), dtype=jnp.float32)
    attr_feat = (raw > 0.9).astype(jnp.float32)

    # Deterministic synthetic "pretrained" embedding.
    # TODO(synk): real module loads pt_emb from args.pt_emb_path (torch.load);
    # synthesized in-script here.
    pt_emb = jax.random.normal(k_emb, (A, D), dtype=jnp.float32)

    out = jax.block_until_ready(ent_init_with_attr(attr_feat, pt_emb))
    ref = _reference(attr_feat, pt_emb)

    assert out.shape == (N, D)
    assert out.dtype == jnp.float32
    assert jnp.allclose(out, ref, atol=1e-3, rtol=1e-3), "mismatch vs reference"

    print("KERNEL_OK")
</pallas_src>

<mosaic_0001>
module attributes {stable_mosaic.version = 11 : i64} {
  func.func @_ent_init_single_strip_kernel(%arg0: i32, %arg1: memref<64x256xi8, #tpu.memory_space<vmem>>, %arg2: memref<256x128xbf16, #tpu.memory_space<vmem>>, %arg3: memref<64x128xf32, #tpu.memory_space<vmem>>) attributes {dimension_semantics = [#tpu.dimension_semantics<parallel>], iteration_bounds = array<i64: 2>, scalar_prefetch = 0 : i64, scratch_operands = 0 : i64, tpu.core_type = #tpu.core_type<tc>, window_params = [{transform_indices = @transform_0, window_bounds = array<i64: 64, 256>}, {pipeline_mode = #tpu.pipeline_mode<synchronous>, transform_indices = @transform_1, window_bounds = array<i64: 256, 128>}, {transform_indices = @transform_2, window_bounds = array<i64: 64, 128>}]} {
    %c0 = arith.constant 0 : index
    %c0_0 = arith.constant 0 : index
    %0 = vector.load %arg1[%c0, %c0_0] : memref<64x256xi8, #tpu.memory_space<vmem>>, vector<64x256xi8>
    %1 = arith.sitofp %0 : vector<64x256xi8> to vector<64x256xbf16>
    %c0_1 = arith.constant 0 : index
    %c0_2 = arith.constant 0 : index
    %2 = vector.load %arg2[%c0_1, %c0_2] : memref<256x128xbf16, #tpu.memory_space<vmem>>, vector<256x128xbf16>
    %cst = arith.constant dense<0.000000e+00> : vector<64x128xf32>
    %3 = tpu.matmul %1, %2, %cst {dimension_numbers = #tpu.dot_dimension_numbers<[1], [0], [0], [1], [0, 0, 1, 1], [], []>} : vector<64x256xbf16>, vector<256x128xbf16>, vector<64x128xf32> -> vector<64x128xf32>
    %4 = arith.extf %1 : vector<64x256xbf16> to vector<64x256xf32>
    %cst_3 = arith.constant dense<0.000000e+00> : vector<64xf32>
    %5 = vector.multi_reduction <add>, %4, %cst_3 [1] : vector<64x256xf32> to vector<64xf32>
    %6 = vector.shape_cast %5 : vector<64xf32> to vector<64x1xf32>
    %cst_4 = arith.constant 9.99999997E-7 : f32
    %7 = vector.broadcast %cst_4 : f32 to vector<64x1xf32>
    %8 = arith.addf %6, %7 : vector<64x1xf32>
    %9 = tpu.reciprocal %8 : vector<64x1xf32> -> vector<64x1xf32>
    %10 = vector.broadcast %9 : vector<64x1xf32> to vector<64x128xf32>
    %11 = arith.mulf %3, %10 : vector<64x128xf32>
    %c0_5 = arith.constant 0 : index
    %c0_6 = arith.constant 0 : index
    %12 = vector.load %arg3[%c0_5, %c0_6] : memref<64x128xf32, #tpu.memory_space<vmem>>, vector<64x128xf32>
    tpu.vector_store %arg3[%c0_5, %c0_6], %11 {strides = array<i32>} : memref<64x128xf32, #tpu.memory_space<vmem>>, vector<64x128xf32>,
    return
  }
  func.func @transform_0(%arg0: i32) -> (i32, i32) {
    %c0_i32 = arith.constant 0 : i32
    %c0_i32_0 = arith.constant 0 : i32
    return %arg0, %c0_i32 : i32, i32
  }
  func.func @transform_1(%arg0: i32) -> (i32, i32) {
    %c0_i32 = arith.constant 0 : i32
    %c0_i32_0 = arith.constant 0 : i32
    %c0_i32_1 = arith.constant 0 : i32
    return %c0_i32, %c0_i32_0 : i32, i32
  }
  func.func @transform_2(%arg0: i32) -> (i32, i32) {
    %c0_i32 = arith.constant 0 : i32
    %c0_i32_0 = arith.constant 0 : i32
    return %arg0, %c0_i32 : i32, i32
  }
}

</mosaic_0001>

<llo_original>
// kernel: tpu_custom_call.1
$region0: #{tpu_custom_call.1}
  #allocation0 [shape = 'u32[]', space=smem, size = 0x4, offset = 0x4, fixed_abs, tag = 'smem constant byte address 0x4 - core index']
  #allocation1 [shape = 'u32[144,128]{1,0:T(1,128)}', space=vmem, size = 0x12000, scoped, tag = 'internal scratch']
  %s0 = inlined_call_operand.hbm [shape: s8[128,256], index: 0, kind: input, shape index: {}]
  %s1 = inlined_call_operand.hbm [shape: bf16[256,128], index: 1, kind: input, shape index: {}]
  %s2 = inlined_call_operand.hbm [shape: f32[128,128], index: 2, kind: output, shape index: {}]
  %s3 = sld [smem:[#allocation0]]
  $region49: #{tpu_custom_call.1} parent=0
    _
  %s5 = ssub.s32 1, %s3
  %s6 = scalar_select 0, %s5, %s3
  $region1: #{tpu_custom_call.1} parent=0
    #allocation2 [shape = 'u8[32768]{0}', space=vmem, size = 0x8000, scoped, tag = 'input window, operand 0']
    #allocation3 [shape = 's32[2]{0}', space=sflag, size = 0x8, scoped, tag = 'scoped memory for tpu_custom_call.1']
    #allocation4 [shape = 's32[2]{0}', space=sflag, size = 0x8, scoped, tag = 'scoped memory for tpu_custom_call.1']
    #allocation5 [shape = 'u8[65536]{0}', space=vmem, size = 0x10000, scoped, tag = 'input window, operand 1, single buffered']
    #allocation6 [shape = 's32[1]{0}', space=sflag, size = 0x4, scoped, tag = 'scoped memory for tpu_custom_call.1']
    #allocation7 [shape = 'u8[65536]{0}', space=vmem, size = 0x10000, scoped, tag = 'output window, operand 0']
    %7 = vsyncpa [#allocation3], 0
    %s8 = scalar_lea.sflag [#allocation3], 1
    %9 = vsyncpa %s8, 0
    %10 = vsyncpa [#allocation6], 0
    %11 = vsyncpa [#allocation4], 0
    %s12 = scalar_lea.sflag [#allocation4], 1
    %13 = vsyncpa %s12, 0
    loop: start=0, step=1, limit=4
    $region2: #{tpu_custom_call.1} parent=1 // loop_pre_header
      _
    $region3: #{tpu_custom_call.1} parent=1 // loop_header
      %s15 = sphi 0, %s19
      %p16 = scmp.ge.s32.totalorder %s15, 4
      %s25 = sphi 0, %s27
      %s28 = sphi 0, %s25
      %s29 = sphi 0, %s28
      %s45 = sphi 0, %s29
      %s49 = sphi 0, %s49
      %s51 = sphi 0, %s49
      %s52 = sphi 0, %s51
      %s66 = sphi 0, %s52
      %s72 = sphi 0, %s74
      %s75 = sphi 0, %s72
      %s76 = sphi 0, %s75
      %s92 = sphi 0, %s76
    $region4: #{tpu_custom_call.1} parent=1 // loop_header_branch
      %18 = sbr.rel (%p16) target = $region8
    $region5: #{tpu_custom_call.1} parent=1 // loop_body
      %s20 = ssub.s32 %s15, 1
      %s21 = ssub.s32 %s15, 2
      %s22 = sadd.s32 %s15, 1
      %s23 = ssub.s32 %s15, %s22
      %p24 = scmp.eq.s32.totalorder %s23, 0
      %s26 = sadd.s32 %s25, 1
      %s27 = scalar_select %p24, %s25, %s26
      %p30 = pneg %p24
      %p31 = scmp.eq.s32.totalorder %s15, 1
      %p32 = por %p30, %p31
      %p33 = scmp.ne.s32.totalorder %s25, %s28
      %p34 = scmp.eq.s32.totalorder %s15, 0
      %p35 = por %p33, %p34
      %p36 = scmp.ne.s32.totalorder %s25, %s28
      %p37 = scmp.eq.s32.totalorder %s20, 1
      %p38 = por %p36, %p37
      %p39 = scmp.ne.s32.totalorder %s28, %s29
      %p40 = scmp.eq.s32.totalorder %s20, 0
      %p41 = por %p39, %p40
      %p42 = scmp.ne.s32.totalorder %s28, %s29
      %p43 = scmp.eq.s32.totalorder %s21, 1
      %p44 = por %p42, %p43
      %p46 = scmp.ne.s32.totalorder %s29, %s45
      %p47 = scmp.eq.s32.totalorder %s21, 0
      %p48 = por %p46, %p47
      %s50 = sadd.s32 %s49, 1
      %p53 = scmp.eq.s32.totalorder %s15, 1
      %p54 = scmp.ne.s32.totalorder %s49, %s51
      %p55 = scmp.eq.s32.totalorder %s15, 0
      %p56 = por %p54, %p55
      %p57 = scmp.ne.s32.totalorder %s49, %s51
      %p58 = scmp.eq.s32.totalorder %s20, 1
      %p59 = por %p57, %p58
      %p60 = scmp.ne.s32.totalorder %s51, %s52
      %p61 = scmp.eq.s32.totalorder %s20, 0
      %p62 = por %p60, %p61
      %p63 = scmp.ne.s32.totalorder %s51, %s52
      %p64 = scmp.eq.s32.totalorder %s21, 1
      %p65 = por %p63, %p64
      %p67 = scmp.ne.s32.totalorder %s52, %s66
      %p68 = scmp.eq.s32.totalorder %s21, 0
      %p69 = por %p67, %p68
      %s70 = ssub.s32 %s15, %s22
      %p71 = scmp.eq.s32.totalorder %s70, 0
      %s73 = sadd.s32 %s72, 1
      %s74 = scalar_select %p71, %s72, %s73
      %p77 = pneg %p71
      %p78 = scmp.eq.s32.totalorder %s15, 1
      %p79 = por %p77, %p78
      %p80 = scmp.ne.s32.totalorder %s72, %s75
      %p81 = scmp.eq.s32.totalorder %s15, 0
      %p82 = por %p80, %p81
      %p83 = scmp.ne.s32.totalorder %s72, %s75
      %p84 = scmp.eq.s32.totalorder %s20, 1
      %p85 = por %p83, %p84
      %p86 = scmp.ne.s32.totalorder %s75, %s76
      %p87 = scmp.eq.s32.totalorder %s20, 0
      %p88 = por %p86, %p87
      %p89 = scmp.ne.s32.totalorder %s75, %s76
      %p90 = scmp.eq.s32.totalorder %s21, 1
      %p91 = por %p89, %p90
      %p93 = scmp.ne.s32.totalorder %s76, %s92
      %p94 = scmp.eq.s32.totalorder %s21, 0
      %p95 = por %p93, %p94
      %p96 = scmp.le.s32.totalorder 1, %s15
      %p97 = scmp.lt.s32.totalorder %s15, 3
      %p98 = pnand %p96, %p97
      %p99 = pneg %p98
      // Predicated region
      $region9: #{tpu_custom_call.1} parent=5 // pred_check
        _
      $region10: #{tpu_custom_call.1} parent=5 // pred_check_branch
        %101 = sbr.rel (%p98) target = $region12
      $region11: #{tpu_custom_call.1} parent=5 // pred_region
        %s102 = ssub.s32 %s15, 1
        // Predicated region
        $region13: #{tpu_custom_call.1} parent=11 // pred_check
          %p103 = pneg %p62
        $region14: #{tpu_custom_call.1} parent=11 // pred_check_branch
          %105 = sbr.rel (%p103) target = $region16
        $region15: #{tpu_custom_call.1} parent=11 // pred_region
          %s107 = ssub.s32 2048, 2048
          %108 = vsyncadd [#allocation6], %s107
          %s109 = sshll.u32 [#allocation5], 4
          %s110 = int_to_ptr.vmem [resolvable:$true] %s109
          %115 = dma.hbm_to_vmem [thread:$0]  %s1, 2048, %s110, [#allocation6], 64, 64, 4
        $region16: #{tpu_custom_call.1} parent=11 // pred_fallthru
          _
      $region12: #{tpu_custom_call.1} parent=5 // pred_fallthru
        _
      %p116 = scmp.lt.s32.totalorder %s15, 2
      // Predicated region
      $region17: #{tpu_custom_call.1} parent=5 // pred_check
        %p117 = pneg %p116
      $region18: #{tpu_custom_call.1} parent=5 // pred_check_branch
        %119 = sbr.rel (%p117) target = $region20
      $region19: #{tpu_custom_call.1} parent=5 // pred_region
        // Predicated region
        $region21: #{tpu_custom_call.1} parent=19 // pred_check
          %p120 = pneg %p35
        $region22: #{tpu_custom_call.1} parent=19 // pred_check_branch
          %122 = sbr.rel (%p120) target = $region24
        $region23: #{tpu_custom_call.1} parent=19 // pred_region
          %s123 = sand.u32 %s25, 1
          %s124 = scalar_lea.sflag [#allocation3], %s123
          %s125 = sand.u32 %s25, 1
          %s126 = smul.addr %s125, 32
          %s127 = scalar_lea.vmem [#allocation2], %s126
          %s128 = smul.u32 2, %s15
          %s130 = ssub.s32 512, 512
          %131 = vsyncadd %s124, %s130
          %s132 = smul.addr %s128, 2
          %s133 = smul.addr %s132, 128
          %s134 = scalar_lea.hbm %s0, %s133
          %s135 = sshll.u32 %s127, 4
          %s136 = int_to_ptr.vmem [resolvable:$true] %s135
          %141 = dma.hbm_to_vmem [thread:$0]  %s134, 512, %s136, %s124, 256, 256, 16
        $region24: #{tpu_custom_call.1} parent=19 // pred_fallthru
          _
      $region20: #{tpu_custom_call.1} parent=5 // pred_fallthru
        _
      %p142 = scmp.le.s32.totalorder 1, %s15
      %p143 = scmp.lt.s32.totalorder %s15, 3
      %p144 = pnand %p142, %p143
      %p145 = pneg %p144
      // Predicated region
      $region25: #{tpu_custom_call.1} parent=5 // pred_check
        _
      $region26: #{tpu_custom_call.1} parent=5 // pred_check_branch
        %147 = sbr.rel (%p144) target = $region28
      $region27: #{tpu_custom_call.1} parent=5 // pred_region
        %s148 = ssub.s32 %s15, 1
        %s149 = sand.u32 %s28, 1
        %s150 = scalar_lea.sflag [#allocation3], %s149
        %s151 = sand.u32 %s28, 1
        %s152 = smul.addr %s151, 32
        %s153 = scalar_lea.vmem [#allocation2], %s152
        // Predicated region
        $region29: #{tpu_custom_call.1} parent=27 // pred_check
          %p154 = pneg %p41
        $region30: #{tpu_custom_call.1} parent=27 // pred_check_branch
          %156 = sbr.rel (%p154) target = $region32
        $region31: #{tpu_custom_call.1} parent=27 // pred_region
          %157 = dma.done %s150, 512
        $region32: #{tpu_custom_call.1} parent=27 // pred_fallthru
          _
        // Predicated region
        $region33: #{tpu_custom_call.1} parent=27 // pred_check
          %p158 = pneg %p62
        $region34: #{tpu_custom_call.1} parent=27 // pred_check_branch
          %160 = sbr.rel (%p158) target = $region36
        $region35: #{tpu_custom_call.1} parent=27 // pred_region
          %161 = dma.done [#allocation6], 2048
        $region36: #{tpu_custom_call.1} parent=27 // pred_fallthru
          _
        %s162 = sand.u32 %s28, 1
        %s163 = scalar_lea.sflag [#allocation3], %s162
        %s164 = sand.u32 %s28, 1
        %s165 = smul.addr %s164, 32
        %s166 = scalar_lea.vmem [#allocation2], %s165
        %p167 = pneg %p41
        %p168 = pneg %p38
        %p169 = pneg %p62
        %p170 = pneg %p59
        %p171 = pneg %p88
        %p172 = pneg %p85
        %s173 = sand.u32 %s75, 1
        %s174 = scalar_lea.sflag [#allocation4], %s173
        %s175 = sand.u32 %s75, 1
        %s176 = smul.addr %s175, 64
        %s177 = scalar_lea.vmem [#allocation7], %s176
        %s178 = smul.u32 2, %s20
        %s179 = smul.u32 8, %s20
        %v181 = vld [vmem:[%s153] sm:$0xff]
        %v182 = vld [vmem:[%s153 + $0x8] sm:$0xff]
        %v183 = vld [vmem:[%s153 + $0x10] sm:$0xff]
        %v184 = vld [vmem:[%s153 + $0x18] sm:$0xff]
        %v185 = vunpack.c.l.s8.bf16 %v181
        %v186 = vunpack.c.l.s8.bf16 %v182
        %v187 = vunpack.c.h.s8.bf16 %v181
        %v188 = vunpack.c.h.s8.bf16 %v182
        %v189 = vunpack.c.l.s8.bf16 %v183
        %v190 = vunpack.c.l.s8.bf16 %v184
        %v191 = vunpack.c.h.s8.bf16 %v183
        %v192 = vunpack.c.h.s8.bf16 %v184
        %v193 = vld [vmem:[#allocation5] sm:$0xf]
        %v194 = vld [vmem:[#allocation5 + $0x4] sm:$0xf]
        %v195 = vld [vmem:[#allocation5 + $0x8] sm:$0xf]
        %v196 = vld [vmem:[#allocation5 + $0xc] sm:$0xf]
        %v197 = vld [vmem:[#allocation5 + $0x10] sm:$0xf]
        %v198 = vld [vmem:[#allocation5 + $0x14] sm:$0xf]
        %v199 = vld [vmem:[#allocation5 + $0x18] sm:$0xf]
        %v200 = vld [vmem:[#allocation5 + $0x1c] sm:$0xf]
        %v201 = vld [vmem:[#allocation5 + $0x20] sm:$0xf]
        %v202 = vld [vmem:[#allocation5 + $0x24] sm:$0xf]
        %v203 = vld [vmem:[#allocation5 + $0x28] sm:$0xf]
        %v204 = vld [vmem:[#allocation5 + $0x2c] sm:$0xf]
        %v205 = vld [vmem:[#allocation5 + $0x30] sm:$0xf]
        %v206 = vld [vmem:[#allocation5 + $0x34] sm:$0xf]
        %v207 = vld [vmem:[#allocation5 + $0x38] sm:$0xf]
        %v208 = vld [vmem:[#allocation5 + $0x3c] sm:$0xf]
        %v209 = vld [vmem:[#allocation5 + $0x40] sm:$0xf]
        %v210 = vld [vmem:[#allocation5 + $0x44] sm:$0xf]
        %v211 = vld [vmem:[#allocation5 + $0x48] sm:$0xf]
        %v212 = vld [vmem:[#allocation5 + $0x4c] sm:$0xf]
        %v213 = vld [vmem:[#allocation5 + $0x50] sm:$0xf]
        %v214 = vld [vmem:[#allocation5 + $0x54] sm:$0xf]
        %v215 = vld [vmem:[#allocation5 + $0x58] sm:$0xf]
        %v216 = vld [vmem:[#allocation5 + $0x5c] sm:$0xf]
        %v217 = vld [vmem:[#allocation5 + $0x60] sm:$0xf]
        %v218 = vld [vmem:[#allocation5 + $0x64] sm:$0xf]
        %v219 = vld [vmem:[#allocation5 + $0x68] sm:$0xf]
        %v220 = vld [vmem:[#allocation5 + $0x6c] sm:$0xf]
        %v221 = vld [vmem:[#allocation5 + $0x70] sm:$0xf]
        %v222 = vld [vmem:[#allocation5 + $0x74] sm:$0xf]
        %v223 = vld [vmem:[#allocation5 + $0x78] sm:$0xf]
        %v224 = vld [vmem:[#allocation5 + $0x7c] sm:$0xf]
        %v257 = vunpack.c.l.b16 %v193
        %v258 = vunpack.c.l.b16 %v194
        %v259 = vunpack.c.l.b16 %v195
        %v260 = vunpack.c.l.b16 %v196
        %v261 = vunpack.c.l.b16 %v197
        %v262 = vunpack.c.l.b16 %v198
        %v263 = vunpack.c.l.b16 %v199
        %v264 = vunpack.c.l.b16 %v200
        %v265 = vunpack.c.l.b16 %v201
        %v266 = vunpack.c.l.b16 %v202
        %v267 = vunpack.c.l.b16 %v203
        %v268 = vunpack.c.l.b16 %v204
        %v269 = vunpack.c.l.b16 %v205
        %v270 = vunpack.c.l.b16 %v206
        %v271 = vunpack.c.l.b16 %v207
        %v272 = vunpack.c.l.b16 %v208
        %v273 = vunpack.c.l.b16 %v209
        %v274 = vunpack.c.l.b16 %v210
        %v275 = vunpack.c.l.b16 %v211
        %v276 = vunpack.c.l.b16 %v212
        %v277 = vunpack.c.l.b16 %v213
        %v278 = vunpack.c.l.b16 %v214
        %v279 = vunpack.c.l.b16 %v215
        %v280 = vunpack.c.l.b16 %v216
        %v281 = vunpack.c.l.b16 %v217
        %v282 = vunpack.c.l.b16 %v218
        %v283 = vunpack.c.l.b16 %v219
        %v284 = vunpack.c.l.b16 %v220
        %v285 = vunpack.c.l.b16 %v221
        %v286 = vunpack.c.l.b16 %v222
        %v287 = vunpack.c.l.b16 %v223
        %v288 = vunpack.c.l.b16 %v224
        %v289 = vpack.c.b16 %v258, %v257
        %v290 = vpack.c.b16 %v260, %v259
        %v291 = vpack.c.b16 %v262, %v261
        %v292 = vpack.c.b16 %v264, %v263
        %v293 = vpack.c.b16 %v266, %v265
        %v294 = vpack.c.b16 %v268, %v267
        %v295 = vpack.c.b16 %v270, %v269
        %v296 = vpack.c.b16 %v272, %v271
        %v297 = vpack.c.b16 %v274, %v273
        %v298 = vpack.c.b16 %v276, %v275
        %v299 = vpack.c.b16 %v278, %v277
        %v300 = vpack.c.b16 %v280, %v279
        %v301 = vpack.c.b16 %v282, %v281
        %v302 = vpack.c.b16 %v284, %v283
        %v303 = vpack.c.b16 %v286, %v285
        %v304 = vpack.c.b16 %v288, %v287
        %321 = vmatprep.subr.bf16.mxu0 0
        %322 = vmatpush1.bf16.msra.mxu0 %v289
        %323 = vmatprep.subr.bf16.mxu0 0
        %324 = vmatpush1.bf16.msra.mxu0 %v290
        %325 = vmatprep.subr.bf16.mxu0 0
        %326 = vmatpush1.bf16.msra.mxu0 %v291
        %327 = vmatprep.subr.bf16.mxu0 0
        %328 = vmatpush1.bf16.msra.mxu0 %v292
        %329 = vmatprep.subr.bf16.mxu0 0
        %330 = vmatpush1.bf16.msra.mxu0 %v293
        %331 = vmatprep.subr.bf16.mxu0 0
        %332 = vmatpush1.bf16.msra.mxu0 %v294
        %333 = vmatprep.subr.bf16.mxu0 0
        %334 = vmatpush1.bf16.msra.mxu0 %v295
        %335 = vmatprep.subr.bf16.mxu0 0
        %336 = vmatpush1.bf16.msra.mxu0 %v296
        %337 = vmatprep.subr.bf16.mxu0 0
        %338 = vmatpush1.bf16.msra.mxu0 %v297
        %339 = vmatprep.subr.bf16.mxu0 0
        %340 = vmatpush1.bf16.msra.mxu0 %v298
        %341 = vmatprep.subr.bf16.mxu0 0
        %342 = vmatpush1.bf16.msra.mxu0 %v299
        %343 = vmatprep.subr.bf16.mxu0 0
        %344 = vmatpush1.bf16.msra.mxu0 %v300
        %345 = vmatprep.subr.bf16.mxu0 0
        %346 = vmatpush1.bf16.msra.mxu0 %v301
        %347 = vmatprep.subr.bf16.mxu0 0
        %348 = vmatpush1.bf16.msra.mxu0 %v302
        %349 = vmatprep.subr.bf16.mxu0 0
        %350 = vmatpush1.bf16.msra.mxu0 %v303
        %351 = vmatprep.subr.bf16.mxu0 0
        %352 = vmatpush1.bf16.msra.mxu0 %v304
        %353 = vmatprep.mubr.bf16.mxu0 %v186
        %354 = vmatmul.mubr.bf16.gmra.mrb[0].mxu0 %v185
        %v355 = vpop.f32.mrb[0].mxu0
        %v356 = vadd.f32 0.0, %v355
        %v357 = vpop.f32.mrb[0].mxu0
        %v358 = vpop.f32.mrb[0].mxu0
        %v359 = vadd.f32 0.0, %v358
        %v360 = vpop.f32.mrb[0].mxu0
        %361 = vmatprep.mubr.bf16.mxu0 %v188
        %362 = vmatmul.mubr.bf16.gmra.mrb[0].mxu0 %v187
        %v363 = vpop.f32.mrb[0].mxu0
        %v364 = vadd.f32 0.0, %v363
        %v365 = vpop.f32.mrb[0].mxu0
        %v366 = vpop.f32.mrb[0].mxu0
        %v367 = vadd.f32 0.0, %v366
        %v368 = vpop.f32.mrb[0].mxu0
        %369 = vmatprep.mubr.bf16.mxu0 %v190
        %370 = vmatmul.mubr.bf16.gmra.mrb[0].mxu0 %v189
        %v371 = vpop.f32.mrb[0].mxu0
        %v372 = vadd.f32 0.0, %v371
        %v373 = vpop.f32.mrb[0].mxu0
        %v374 = vpop.f32.mrb[0].mxu0
        %v375 = vadd.f32 0.0, %v374
        %v376 = vpop.f32.mrb[0].mxu0
        %377 = vmatprep.mubr.bf16.mxu0 %v192
        %378 = vmatmul.mubr.bf16.gmra.mrb[0].mxu0 %v191
        %v379 = vpop.f32.mrb[0].mxu0
        %v380 = vadd.f32 0.0, %v379
        %v381 = vpop.f32.mrb[0].mxu0
        %v382 = vpop.f32.mrb[0].mxu0
        %v383 = vadd.f32 0.0, %v382
        %v384 = vpop.f32.mrb[0].mxu0
        %385 = vdwg.mxu0
        %v386 = vunpack.c.l.bf16 %v185
        %v387 = vunpack.c.l.bf16 %v186
        %v388 = vunpack.c.h.bf16 %v185
        %v389 = vunpack.c.h.bf16 %v186
        %v390 = vunpack.c.l.bf16 %v187
        %v391 = vunpack.c.l.bf16 %v188
        %v392 = vunpack.c.h.bf16 %v187
        %v393 = vunpack.c.h.bf16 %v188
        %v394 = vunpack.c.l.bf16 %v189
        %v395 = vunpack.c.l.bf16 %v190
        %v396 = vunpack.c.h.bf16 %v189
        %v397 = vunpack.c.h.bf16 %v190
        %v398 = vunpack.c.l.bf16 %v191
        %v399 = vunpack.c.l.bf16 %v192
        %v400 = vunpack.c.h.bf16 %v191
        %v401 = vunpack.c.h.bf16 %v192
        %v402 = vadd.f32 %v386, %v387
        %403 = vadd.xlane.f32.xlu0 %v402
        %v404 = vpop.xlane.xlu0 %403
        %v405 = vadd.f32 %v388, %v389
        %406 = vadd.xlane.f32.xlu0 %v405
        %v407 = vpop.xlane.xlu0 %406
        %v408 = vadd.f32 %v390, %v391
        %409 = vadd.xlane.f32.xlu0 %v408
        %v410 = vpop.xlane.xlu0 %409
        %v411 = vadd.f32 %v392, %v393
        %412 = vadd.xlane.f32.xlu0 %v411
        %v413 = vpop.xlane.xlu0 %412
        %v414 = vadd.f32 %v394, %v395
        %415 = vadd.xlane.f32.xlu0 %v414
        %v416 = vpop.xlane.xlu0 %415
        %v417 = vadd.f32 %v396, %v397
        %418 = vadd.xlane.f32.xlu0 %v417
        %v419 = vpop.xlane.xlu0 %418
        %v420 = vadd.f32 %v398, %v399
        %421 = vadd.xlane.f32.xlu0 %v420
        %v422 = vpop.xlane.xlu0 %421
        %v423 = vadd.f32 %v400, %v401
        %424 = vadd.xlane.f32.xlu0 %v423
        %v425 = vpop.xlane.xlu0 %424
        %v426 = vadd.f32 %v404, 1e-06
        %v427 = vadd.f32 %v407, 1e-06
        %v428 = vadd.f32 %v410, 1e-06
        %v429 = vadd.f32 %v413, 1e-06
        %v430 = vadd.f32 %v416, 1e-06
        %v431 = vadd.f32 %v419, 1e-06
        %v432 = vadd.f32 %v422, 1e-06
        %v433 = vadd.f32 %v425, 1e-06
        %v434 = vrcp.pop %v426
        %v435 = vrcp.pop %v427
        %v436 = vrcp.pop %v428
        %v437 = vrcp.pop %v429
        %v438 = vrcp.pop %v430
        %v439 = vrcp.pop %v431
        %v440 = vrcp.pop %v432
        %v441 = vrcp.pop %v433
        %v442 = vmul.f32 %v356, %v434
        %v443 = vmul.f32 %v359, %v435
        %v444 = vmul.f32 %v364, %v436
        %v445 = vmul.f32 %v367, %v437
        %v446 = vmul.f32 %v372, %v438
        %v447 = vmul.f32 %v375, %v439
        %v448 = vmul.f32 %v380, %v440
        %v449 = vmul.f32 %v383, %v441
        %450 = vst [vmem:[%s177] sm:$0xff] %v442
        %451 = vst [vmem:[%s177 + $0x8] sm:$0xff] %v443
        %452 = vst [vmem:[%s177 + $0x10] sm:$0xff] %v444
        %453 = vst [vmem:[%s177 + $0x18] sm:$0xff] %v445
        %454 = vst [vmem:[%s177 + $0x20] sm:$0xff] %v446
        %455 = vst [vmem:[%s177 + $0x28] sm:$0xff] %v447
        %456 = vst [vmem:[%s177 + $0x30] sm:$0xff] %v448
        %457 = vst [vmem:[%s177 + $0x38] sm:$0xff] %v449
        %s458 = sand.u32 %s75, 1
        %s459 = scalar_lea.sflag [#allocation4], %s458
        %s460 = sand.u32 %s75, 1
        %s461 = smul.addr %s460, 64
        %s462 = scalar_lea.vmem [#allocation7], %s461
        // Predicated region
        $region37: #{tpu_custom_call.1} parent=27 // pred_check
          %p463 = pneg %p85
        $region38: #{tpu_custom_call.1} parent=27 // pred_check_branch
          %465 = sbr.rel (%p463) target = $region40
        $region39: #{tpu_custom_call.1} parent=27 // pred_region
          %s466 = smul.u32 8, %s20
          %s468 = ssub.s32 1024, 1024
          %469 = vsyncadd %s459, %s468
          %s470 = smul.addr %s466, 128
          %s471 = scalar_lea.hbm %s2, %s470
          %s472 = sshll.u32 %s462, 4
          %s473 = int_to_ptr.vmem [resolvable:$true] %s472
          %478 = dma.vmem_to_hbm [thread:$0]  %s473, 1024, %s471, %s459, 128, 128, 8
        $region40: #{tpu_custom_call.1} parent=27 // pred_fallthru
          _
      $region28: #{tpu_custom_call.1} parent=5 // pred_fallthru
        _
      %p479 = scmp.le.s32.totalorder 2, %s15
      // Predicated region
      $region41: #{tpu_custom_call.1} parent=5 // pred_check
        %p480 = pneg %p479
      $region42: #{tpu_custom_call.1} parent=5 // pred_check_branch
        %482 = sbr.rel (%p480) target = $region44
      $region43: #{tpu_custom_call.1} parent=5 // pred_region
        %s483 = ssub.s32 %s15, 2
        // Predicated region
        $region45: #{tpu_custom_call.1} parent=43 // pred_check
          %p484 = pneg %p91
        $region46: #{tpu_custom_call.1} parent=43 // pred_check_branch
          %486 = sbr.rel (%p484) target = $region48
        $region47: #{tpu_custom_call.1} parent=43 // pred_region
          %s487 = sand.u32 %s76, 1
          %s488 = scalar_lea.sflag [#allocation4], %s487
          %s489 = sand.u32 %s76, 1
          %s490 = smul.addr %s489, 64
          %s491 = scalar_lea.vmem [#allocation7], %s490
          %492 = dma.done %s488, 1024
        $region48: #{tpu_custom_call.1} parent=43 // pred_fallthru
          _
      $region44: #{tpu_custom_call.1} parent=5 // pred_fallthru
        _
    $region6: #{tpu_custom_call.1} parent=1 // loop_footer
      %s19 = sadd.s32 1, %s15
    $region7: #{tpu_custom_call.1} parent=1 // loop_footer_branch
      %14 = sbr.rel target = $region3
    $region8: #{tpu_custom_call.1} parent=1 // loop_exit
      _
    %493 = vsyncpa [#allocation3], 1
    %s494 = scalar_lea.sflag [#allocation3], 1
    %495 = vsyncpa %s494, 1
    %496 = vsyncpa [#allocation6], 1
    %497 = vsyncpa [#allocation4], 1
    %s498 = scalar_lea.sflag [#allocation4], 1
    %499 = vsyncpa %s498, 1

</llo_original>
